<compile_context>
chip_gen: v7x
topology: tpu7x:2x2x1
jax: 0.10.0
libtpu: 0.0.40
codegen_flags: <defaults>
</compile_context>

<pallas_src>
import functools

import jax
import jax.numpy as jnp
from jax.experimental import pallas as pl
from jax.experimental.pallas import tpu as pltpu

EPS = 1e-8


def _round_up(n, m=128):
    return ((n + m - 1) // m) * m


def _glob_ln_fused(h, gamma, beta, mask, inv_n):
    """Fused Global LayerNorm over (chan, time) of one batch element.

    One pass for stats (masked sum / sum-of-squares over valid lanes), then a
    single fused scale/shift. gamma/beta are (hid, 1), broadcast over time.
    """
    hm = jnp.where(mask, h, 0.0)
    s1 = jnp.sum(hm)
    s2 = jnp.sum(hm * hm)
    mean = s1 * inv_n
    var = jnp.maximum(s2 * inv_n - mean * mean, 0.0)
    scale = gamma * jax.lax.rsqrt(var + EPS)      # rsqrt -> EUP slot
    shift = beta - mean * scale
    return h * scale + shift


def conv1d_block_kernel(
    a1_ref, a2_ref,                               # SMEM (1,) PReLU alphas
    x_ref,                                        # (1, in_chan, Lp)
    w1_ref, b1_ref, g1_ref, be1_ref,              # in_conv1d + GlobLN 1
    wd_ref, bd_ref, g2_ref, be2_ref,              # depth_conv1d + GlobLN 2
    w3_ref, b3_ref,                               # res_conv
    o_ref,                                        # (1, in_chan, Op)
    hp_ref,                                       # VMEM scratch (hid, Wp): padded h
    *, kernel_size, padding, dilation, T, T_out, PL,
):
    hid = w1_ref.shape[0]
    Lp = x_ref.shape[2]
    Op = o_ref.shape[2]
    Wp = hp_ref.shape[1]

    x = x_ref[0]                                  # (in_chan, Lp)

    lane_in = jax.lax.broadcasted_iota(jnp.int32, (1, Lp), 1)
    mask_in = lane_in < T                         # valid (unpadded) time lanes

    # ---- 1x1 conv: (hid, in) @ (in, Lp) -> (hid, Lp), + PReLU + GlobLN ------
    h = jnp.dot(w1_ref[...], x, preferred_element_type=jnp.float32) + b1_ref[...]
    a1 = a1_ref[0]
    h = jnp.where(h >= 0.0, h, a1 * h)
    h = _glob_ln_fused(h, g1_ref[...], be1_ref[...], mask_in, 1.0 / (hid * T))

    # ---- depthwise dilated conv via zero-padded VMEM scratch ----------------
    # Scratch layout: [0, PL) zeros | [PL, PL+Lp) masked h | [PL+Lp, Wp) zeros
    # (all strips are 128-aligned, so every write is a full unmasked store).
    if PL > 0:
        hp_ref[:, 0:PL] = jnp.zeros((hid, PL), jnp.float32)
    if Wp > PL + Lp:
        hp_ref[:, PL + Lp:Wp] = jnp.zeros((hid, Wp - PL - Lp), jnp.float32)
    hp_ref[:, PL:PL + Lp] = jnp.where(mask_in, h, 0.0)

    base = PL - padding                           # static, >= 0
    # bias folded into tap 0 -> no zeros-init of the accumulator
    y = bd_ref[...] + wd_ref[:, 0:1] * hp_ref[:, base:base + Op]
    for k in range(1, kernel_size):               # small static tap loop
        s = base + k * dilation
        y = y + wd_ref[:, k:k + 1] * hp_ref[:, s:s + Op]

    # ---- PReLU + GlobLN ------------------------------------------------------
    a2 = a2_ref[0]
    y = jnp.where(y >= 0.0, y, a2 * y)
    lane_out = jax.lax.broadcasted_iota(jnp.int32, (1, Op), 1)
    mask_out = lane_out < T_out
    y = _glob_ln_fused(y, g2_ref[...], be2_ref[...], mask_out, 1.0 / (hid * T_out))

    # ---- res 1x1 conv: (in, hid) @ (hid, Op) -> (in, Op) ---------------------
    res = jnp.dot(w3_ref[...], y, preferred_element_type=jnp.float32) + b3_ref[...]
    o_ref[0] = res.astype(o_ref.dtype)


def conv1d_block(x, params, *, kernel_size, padding, dilation):
    """x: (B, in_chan, T) float32. params: dict of weights (see make_params)."""
    B, in_chan, T = x.shape
    hid = params["w1"].shape[0]
    T_out = T + 2 * padding - dilation * (kernel_size - 1)
    assert T_out > 0

    Lp = _round_up(T)                # lane-dense input / hidden width
    Op = _round_up(T_out)            # lane-dense output width
    PL = _round_up(padding)          # aligned left-pad strip in the scratch
    Wp = _round_up(max(PL + Lp,
                       PL - padding + (kernel_size - 1) * dilation + Op))

    # pad time up to a 128-lane multiple; padded lanes are masked out of stats
    xp = jnp.pad(x, ((0, 0), (0, 0), (0, Lp - T)))

    smem_spec = pl.BlockSpec(memory_space=pltpu.MemorySpace.SMEM)

    def full(arr):
        n = arr.ndim
        return pl.BlockSpec(arr.shape, lambda b, n=n: (0,) * n)

    weight_order = ["w1", "b1", "g1", "be1",
                    "wd", "bd", "g2", "be2",
                    "w3", "b3"]
    weight_args = [params[k] for k in weight_order]
    weight_specs = [full(params[k]) for k in weight_order]

    kernel = functools.partial(
        conv1d_block_kernel,
        kernel_size=kernel_size, padding=padding, dilation=dilation,
        T=T, T_out=T_out, PL=PL,
    )

    out = pl.pallas_call(
        kernel,
        out_shape=jax.ShapeDtypeStruct((B, in_chan, Op), x.dtype),
        grid_spec=pltpu.PrefetchScalarGridSpec(
            num_scalar_prefetch=0,
            grid=(B,),
            in_specs=[smem_spec, smem_spec,
                      pl.BlockSpec((1, in_chan, Lp), lambda b: (b, 0, 0))]
                     + weight_specs,
            out_specs=pl.BlockSpec((1, in_chan, Op), lambda b: (b, 0, 0)),
            scratch_shapes=[pltpu.VMEM((hid, Wp), jnp.float32)],
        ),
        compiler_params=pltpu.CompilerParams(
            dimension_semantics=("parallel",),      # batch elements independent
            vmem_limit_bytes=48 * 1024 * 1024,
        ),
    )(params["a1"], params["a2"], xp, *weight_args)

    return out[:, :, :T_out]


def make_params(key, in_chan, hid_chan, kernel_size):
    """Deterministic synthetic parameters matching the PyTorch module's shapes."""
    ks = jax.random.split(key, 6)
    f32 = jnp.float32
    params = {
        # in_conv1d: Conv1d(in_chan, hid_chan, 1)
        "w1": jax.random.normal(ks[0], (hid_chan, in_chan), f32) * 0.1,
        "b1": jax.random.normal(ks[1], (hid_chan, 1), f32) * 0.1,
        # PReLU default init = 0.25 (single shared parameter)
        "a1": jnp.full((1,), 0.25, f32),
        # GlobLN(hid_chan): gamma=1, beta=0
        "g1": jnp.ones((hid_chan, 1), f32),
        "be1": jnp.zeros((hid_chan, 1), f32),
        # depth_conv1d: Conv1d(hid, hid, K, groups=hid) -> weight (hid, 1, K)
        "wd": jax.random.normal(ks[2], (hid_chan, kernel_size), f32) * 0.3,
        "bd": jax.random.normal(ks[3], (hid_chan, 1), f32) * 0.1,
        "a2": jnp.full((1,), 0.25, f32),
        "g2": jnp.ones((hid_chan, 1), f32),
        "be2": jnp.zeros((hid_chan, 1), f32),
        # res_conv: Conv1d(hid_chan, in_chan, 1)
        "w3": jax.random.normal(ks[4], (in_chan, hid_chan), f32) * 0.1,
        "b3": jax.random.normal(ks[5], (in_chan, 1), f32) * 0.1,
    }
    return params


def ref_forward(x, p, *, kernel_size, padding, dilation):
    """Pure-JAX reference of the PyTorch forward, for verification."""
    def gln(h, gamma, beta):
        mean = h.mean(axis=(1, 2), keepdims=True)
        var = ((h - mean) ** 2).mean(axis=(1, 2), keepdims=True)
        return gamma[None] * ((h - mean) / jnp.sqrt(var + EPS)) + beta[None]

    h = jnp.einsum("oc,bct->bot", p["w1"], x) + p["b1"][None]
    h = jnp.where(h >= 0, h, p["a1"][0] * h)
    h = gln(h, p["g1"], p["be1"])

    T = x.shape[2]
    T_out = T + 2 * padding - dilation * (kernel_size - 1)
    hp = jnp.pad(h, ((0, 0), (0, 0), (padding, padding)))
    y = jnp.zeros((x.shape[0], p["wd"].shape[0], T_out), jnp.float32)
    for k in range(kernel_size):
        s = k * dilation
        y = y + p["wd"][None, :, k:k + 1] * hp[:, :, s:s + T_out]
    y = y + p["bd"][None]
    y = jnp.where(y >= 0, y, p["a2"][0] * y)
    y = gln(y, p["g2"], p["be2"])
    return jnp.einsum("oc,bct->bot", p["w3"], y) + p["b3"][None]


if __name__ == "__main__":
    B, in_chan, hid_chan, T = 2, 8, 16, 32
    kernel_size, dilation = 3, 2
    padding = dilation * (kernel_size - 1) // 2   # keeps T_out == T (Conv-TasNet style)

    key = jax.random.PRNGKey(0)
    kx, kp = jax.random.split(key)
    x = jax.random.normal(kx, (B, in_chan, T), jnp.float32)
    params = make_params(kp, in_chan, hid_chan, kernel_size)

    out = conv1d_block(x, params,
                       kernel_size=kernel_size, padding=padding, dilation=dilation)
    out = jax.block_until_ready(out)

    ref = ref_forward(x, params,
                      kernel_size=kernel_size, padding=padding, dilation=dilation)
    assert out.shape == ref.shape, (out.shape, ref.shape)
    assert jnp.allclose(out, ref, atol=2e-4, rtol=2e-4), float(jnp.max(jnp.abs(out - ref)))

    print("KERNEL_OK")
</pallas_src>

<mosaic_0001>
module attributes {stable_mosaic.version = 11 : i64} {
  func.func @conv1d_block_kernel(%arg0: i32, %arg1: memref<1xf32, #tpu.memory_space<smem>>, %arg2: memref<1xf32, #tpu.memory_space<smem>>, %arg3: memref<1x8x128xf32, #tpu.memory_space<vmem>>, %arg4: memref<16x8xf32, #tpu.memory_space<vmem>>, %arg5: memref<16x1xf32, #tpu.memory_space<vmem>>, %arg6: memref<16x1xf32, #tpu.memory_space<vmem>>, %arg7: memref<16x1xf32, #tpu.memory_space<vmem>>, %arg8: memref<16x3xf32, #tpu.memory_space<vmem>>, %arg9: memref<16x1xf32, #tpu.memory_space<vmem>>, %arg10: memref<16x1xf32, #tpu.memory_space<vmem>>, %arg11: memref<16x1xf32, #tpu.memory_space<vmem>>, %arg12: memref<8x16xf32, #tpu.memory_space<vmem>>, %arg13: memref<8x1xf32, #tpu.memory_space<vmem>>, %arg14: memref<1x8x128xf32, #tpu.memory_space<vmem>>, %arg15: memref<16x384xf32, #tpu.memory_space<vmem>>) attributes {dimension_semantics = [#tpu.dimension_semantics<parallel>], iteration_bounds = array<i64: 2>, scalar_prefetch = 0 : i64, scratch_operands = 1 : i64, tpu.core_type = #tpu.core_type<tc>, window_params = [{transform_indices = @transform_0, window_bounds = array<i64: 1>}, {transform_indices = @transform_1, window_bounds = array<i64: 1>}, {transform_indices = @transform_2, window_bounds = array<i64: 1, 8, 128>}, {pipeline_mode = #tpu.pipeline_mode<synchronous>, transform_indices = @transform_3, window_bounds = array<i64: 16, 8>}, {pipeline_mode = #tpu.pipeline_mode<synchronous>, transform_indices = @transform_4, window_bounds = array<i64: 16, 1>}, {pipeline_mode = #tpu.pipeline_mode<synchronous>, transform_indices = @transform_5, window_bounds = array<i64: 16, 1>}, {pipeline_mode = #tpu.pipeline_mode<synchronous>, transform_indices = @transform_6, window_bounds = array<i64: 16, 1>}, {pipeline_mode = #tpu.pipeline_mode<synchronous>, transform_indices = @transform_7, window_bounds = array<i64: 16, 3>}, {pipeline_mode = #tpu.pipeline_mode<synchronous>, transform_indices = @transform_8, window_bounds = array<i64: 16, 1>}, {pipeline_mode = #tpu.pipeline_mode<synchronous>, transform_indices = @transform_9, window_bounds = array<i64: 16, 1>}, {pipeline_mode = #tpu.pipeline_mode<synchronous>, transform_indices = @transform_10, window_bounds = array<i64: 16, 1>}, {pipeline_mode = #tpu.pipeline_mode<synchronous>, transform_indices = @transform_11, window_bounds = array<i64: 8, 16>}, {pipeline_mode = #tpu.pipeline_mode<synchronous>, transform_indices = @transform_12, window_bounds = array<i64: 8, 1>}, {transform_indices = @transform_13, window_bounds = array<i64: 1, 8, 128>}]} {
    %c0 = arith.constant 0 : index
    %c0_0 = arith.constant 0 : index
    %c0_1 = arith.constant 0 : index
    %0 = vector.load %arg3[%c0, %c0_0, %c0_1] : memref<1x8x128xf32, #tpu.memory_space<vmem>>, vector<1x8x128xf32>
    %1 = vector.shape_cast %0 : vector<1x8x128xf32> to vector<8x128xf32>
    %2 = tpu.iota {dimensions = array<i32: 1>} : vector<1x128xi32>
    %c32_i32 = arith.constant 32 : i32
    %3 = vector.broadcast %c32_i32 : i32 to vector<1x128xi32>
    %4 = arith.cmpi slt, %2, %3 : vector<1x128xi32>
    %c0_2 = arith.constant 0 : index
    %c0_3 = arith.constant 0 : index
    %5 = vector.load %arg4[%c0_2, %c0_3] : memref<16x8xf32, #tpu.memory_space<vmem>>, vector<16x8xf32>
    %cst = arith.constant dense<0.000000e+00> : vector<16x128xf32>
    %6 = tpu.matmul %5, %1, %cst {dimension_numbers = #tpu.dot_dimension_numbers<[1], [0], [0], [1], [0, 0, 1, 1], [], []>} : vector<16x8xf32>, vector<8x128xf32>, vector<16x128xf32> -> vector<16x128xf32>
    %c0_4 = arith.constant 0 : index
    %c0_5 = arith.constant 0 : index
    %7 = vector.load %arg5[%c0_4, %c0_5] : memref<16x1xf32, #tpu.memory_space<vmem>>, vector<16x1xf32>
    %8 = vector.broadcast %7 : vector<16x1xf32> to vector<16x128xf32>
    %9 = arith.addf %6, %8 : vector<16x128xf32>
    %c0_6 = arith.constant 0 : index
    %10 = memref.load %arg1[%c0_6] : memref<1xf32, #tpu.memory_space<smem>>
    %cst_7 = arith.constant 0.000000e+00 : f32
    %11 = vector.broadcast %cst_7 : f32 to vector<16x128xf32>
    %12 = arith.cmpf oge, %9, %11 : vector<16x128xf32>
    %13 = vector.broadcast %10 : f32 to vector<16x128xf32>
    %14 = arith.mulf %13, %9 : vector<16x128xf32>
    %15 = arith.select %12, %9, %14 : vector<16x128xi1>, vector<16x128xf32>
    %c0_8 = arith.constant 0 : index
    %c0_9 = arith.constant 0 : index
    %16 = vector.load %arg6[%c0_8, %c0_9] : memref<16x1xf32, #tpu.memory_space<vmem>>, vector<16x1xf32>
    %c0_10 = arith.constant 0 : index
    %c0_11 = arith.constant 0 : index
    %17 = vector.load %arg7[%c0_10, %c0_11] : memref<16x1xf32, #tpu.memory_space<vmem>>, vector<16x1xf32>
    %cst_12 = arith.constant 0.000000e+00 : f32
    %18 = vector.shape_cast %4 : vector<1x128xi1> to vector<1x128xi1>
    %19 = vector.broadcast %18 : vector<1x128xi1> to vector<16x128xi1>
    %20 = vector.broadcast %cst_12 : f32 to vector<16x128xf32>
    %21 = arith.select %19, %15, %20 : vector<16x128xi1>, vector<16x128xf32>
    %22 = vector.shape_cast %21 : vector<16x128xf32> to vector<1x16x128xf32>
    %cst_13 = arith.constant dense<0.000000e+00> : vector<1xf32>
    %23 = vector.multi_reduction <add>, %22, %cst_13 [1, 2] : vector<1x16x128xf32> to vector<1xf32>
    %24 = vector.shape_cast %23 : vector<1xf32> to vector<1x1x1xf32>
    %25 = vector.extract %24[0, 0, 0] : f32 from vector<1x1x1xf32>
    %26 = arith.mulf %21, %21 : vector<16x128xf32>
    %27 = vector.shape_cast %26 : vector<16x128xf32> to vector<1x16x128xf32>
    %cst_14 = arith.constant dense<0.000000e+00> : vector<1xf32>
    %28 = vector.multi_reduction <add>, %27, %cst_14 [1, 2] : vector<1x16x128xf32> to vector<1xf32>
    %29 = vector.shape_cast %28 : vector<1xf32> to vector<1x1x1xf32>
    %30 = vector.extract %29[0, 0, 0] : f32 from vector<1x1x1xf32>
    %cst_15 = arith.constant 0.001953125 : f32
    %31 = arith.mulf %25, %cst_15 : f32
    %cst_16 = arith.constant 0.001953125 : f32
    %32 = arith.mulf %30, %cst_16 : f32
    %33 = arith.mulf %31, %31 : f32
    %34 = arith.subf %32, %33 : f32
    %cst_17 = arith.constant 0.000000e+00 : f32
    %35 = arith.maximumf %34, %cst_17 : f32
    %cst_18 = arith.constant 9.99999993E-9 : f32
    %36 = arith.addf %35, %cst_18 : f32
    %37 = math.rsqrt %36 : f32
    %38 = vector.broadcast %37 : f32 to vector<16x1xf32>
    %39 = arith.mulf %16, %38 : vector<16x1xf32>
    %40 = vector.broadcast %31 : f32 to vector<16x1xf32>
    %41 = arith.mulf %40, %39 : vector<16x1xf32>
    %42 = arith.subf %17, %41 : vector<16x1xf32>
    %43 = vector.broadcast %39 : vector<16x1xf32> to vector<16x128xf32>
    %44 = arith.mulf %15, %43 : vector<16x128xf32>
    %45 = vector.broadcast %42 : vector<16x1xf32> to vector<16x128xf32>
    %46 = arith.addf %44, %45 : vector<16x128xf32>
    %cst_19 = arith.constant 0.000000e+00 : f32
    %47 = vector.broadcast %cst_19 : f32 to vector<16x128xf32>
    %c0_20 = arith.constant 0 : index
    %c0_21 = arith.constant 0 : index
    %48 = vector.load %arg15[%c0_20, %c0_21] : memref<16x384xf32, #tpu.memory_space<vmem>>, vector<16x128xf32>
    tpu.vector_store %arg15[%c0_20, %c0_21], %47 {strides = array<i32>} : memref<16x384xf32, #tpu.memory_space<vmem>>, vector<16x128xf32>,
    %cst_22 = arith.constant 0.000000e+00 : f32
    %49 = vector.broadcast %cst_22 : f32 to vector<16x128xf32>
    %c0_23 = arith.constant 0 : index
    %c256 = arith.constant 256 : index
    %50 = vector.load %arg15[%c0_23, %c256] : memref<16x384xf32, #tpu.memory_space<vmem>>, vector<16x128xf32>
    tpu.vector_store %arg15[%c0_23, %c256], %49 {strides = array<i32>} : memref<16x384xf32, #tpu.memory_space<vmem>>, vector<16x128xf32>,
    %cst_24 = arith.constant 0.000000e+00 : f32
    %51 = vector.shape_cast %4 : vector<1x128xi1> to vector<1x128xi1>
    %52 = vector.broadcast %51 : vector<1x128xi1> to vector<16x128xi1>
    %53 = vector.broadcast %cst_24 : f32 to vector<16x128xf32>
    %54 = arith.select %52, %46, %53 : vector<16x128xi1>, vector<16x128xf32>
    %c0_25 = arith.constant 0 : index
    %c128 = arith.constant 128 : index
    %55 = vector.load %arg15[%c0_25, %c128] : memref<16x384xf32, #tpu.memory_space<vmem>>, vector<16x128xf32>
    tpu.vector_store %arg15[%c0_25, %c128], %54 {strides = array<i32>} : memref<16x384xf32, #tpu.memory_space<vmem>>, vector<16x128xf32>,
    %c0_26 = arith.constant 0 : index
    %c0_27 = arith.constant 0 : index
    %56 = vector.load %arg9[%c0_26, %c0_27] : memref<16x1xf32, #tpu.memory_space<vmem>>, vector<16x1xf32>
    %c0_28 = arith.constant 0 : index
    %c0_29 = arith.constant 0 : index
    %57 = vector.load %arg8[%c0_28, %c0_29] : memref<16x3xf32, #tpu.memory_space<vmem>>, vector<16x1xf32>
    %c0_30 = arith.constant 0 : index
    %c126 = arith.constant 126 : index
    %58 = vector.load %arg15[%c0_30, %c126] : memref<16x384xf32, #tpu.memory_space<vmem>>, vector<16x128xf32>
    %59 = vector.broadcast %57 : vector<16x1xf32> to vector<16x128xf32>
    %60 = arith.mulf %59, %58 : vector<16x128xf32>
    %61 = vector.broadcast %56 : vector<16x1xf32> to vector<16x128xf32>
    %62 = arith.addf %61, %60 : vector<16x128xf32>
    %c0_31 = arith.constant 0 : index
    %c1 = arith.constant 1 : index
    %63 = vector.load %arg8[%c0_31, %c1] : memref<16x3xf32, #tpu.memory_space<vmem>>, vector<16x1xf32>
    %c0_32 = arith.constant 0 : index
    %c128_33 = arith.constant 128 : index
    %64 = vector.load %arg15[%c0_32, %c128_33] : memref<16x384xf32, #tpu.memory_space<vmem>>, vector<16x128xf32>
    %65 = vector.broadcast %63 : vector<16x1xf32> to vector<16x128xf32>
    %66 = arith.mulf %65, %64 : vector<16x128xf32>
    %67 = arith.addf %62, %66 : vector<16x128xf32>
    %c0_34 = arith.constant 0 : index
    %c2 = arith.constant 2 : index
    %68 = vector.load %arg8[%c0_34, %c2] : memref<16x3xf32, #tpu.memory_space<vmem>>, vector<16x1xf32>
    %c0_35 = arith.constant 0 : index
    %c130 = arith.constant 130 : index
    %69 = vector.load %arg15[%c0_35, %c130] : memref<16x384xf32, #tpu.memory_space<vmem>>, vector<16x128xf32>
    %70 = vector.broadcast %68 : vector<16x1xf32> to vector<16x128xf32>
    %71 = arith.mulf %70, %69 : vector<16x128xf32>
    %72 = arith.addf %67, %71 : vector<16x128xf32>
    %c0_36 = arith.constant 0 : index
    %73 = memref.load %arg2[%c0_36] : memref<1xf32, #tpu.memory_space<smem>>
    %cst_37 = arith.constant 0.000000e+00 : f32
    %74 = vector.broadcast %cst_37 : f32 to vector<16x128xf32>
    %75 = arith.cmpf oge, %72, %74 : vector<16x128xf32>
    %76 = vector.broadcast %73 : f32 to vector<16x128xf32>
    %77 = arith.mulf %76, %72 : vector<16x128xf32>
    %78 = arith.select %75, %72, %77 : vector<16x128xi1>, vector<16x128xf32>
    %79 = tpu.iota {dimensions = array<i32: 1>} : vector<1x128xi32>
    %c32_i32_38 = arith.constant 32 : i32
    %80 = vector.broadcast %c32_i32_38 : i32 to vector<1x128xi32>
    %81 = arith.cmpi slt, %79, %80 : vector<1x128xi32>
    %c0_39 = arith.constant 0 : index
    %c0_40 = arith.constant 0 : index
    %82 = vector.load %arg10[%c0_39, %c0_40] : memref<16x1xf32, #tpu.memory_space<vmem>>, vector<16x1xf32>
    %c0_41 = arith.constant 0 : index
    %c0_42 = arith.constant 0 : index
    %83 = vector.load %arg11[%c0_41, %c0_42] : memref<16x1xf32, #tpu.memory_space<vmem>>, vector<16x1xf32>
    %cst_43 = arith.constant 0.000000e+00 : f32
    %84 = vector.shape_cast %81 : vector<1x128xi1> to vector<1x128xi1>
    %85 = vector.broadcast %84 : vector<1x128xi1> to vector<16x128xi1>
    %86 = vector.broadcast %cst_43 : f32 to vector<16x128xf32>
    %87 = arith.select %85, %78, %86 : vector<16x128xi1>, vector<16x128xf32>
    %88 = vector.shape_cast %87 : vector<16x128xf32> to vector<1x16x128xf32>
    %cst_44 = arith.constant dense<0.000000e+00> : vector<1xf32>
    %89 = vector.multi_reduction <add>, %88, %cst_44 [1, 2] : vector<1x16x128xf32> to vector<1xf32>
    %90 = vector.shape_cast %89 : vector<1xf32> to vector<1x1x1xf32>
    %91 = vector.extract %90[0, 0, 0] : f32 from vector<1x1x1xf32>
    %92 = arith.mulf %87, %87 : vector<16x128xf32>
    %93 = vector.shape_cast %92 : vector<16x128xf32> to vector<1x16x128xf32>
    %cst_45 = arith.constant dense<0.000000e+00> : vector<1xf32>
    %94 = vector.multi_reduction <add>, %93, %cst_45 [1, 2] : vector<1x16x128xf32> to vector<1xf32>
    %95 = vector.shape_cast %94 : vector<1xf32> to vector<1x1x1xf32>
    %96 = vector.extract %95[0, 0, 0] : f32 from vector<1x1x1xf32>
    %cst_46 = arith.constant 0.001953125 : f32
    %97 = arith.mulf %91, %cst_46 : f32
    %cst_47 = arith.constant 0.001953125 : f32
    %98 = arith.mulf %96, %cst_47 : f32
    %99 = arith.mulf %97, %97 : f32
    %100 = arith.subf %98, %99 : f32
    %cst_48 = arith.constant 0.000000e+00 : f32
    %101 = arith.maximumf %100, %cst_48 : f32
    %cst_49 = arith.constant 9.99999993E-9 : f32
    %102 = arith.addf %101, %cst_49 : f32
    %103 = math.rsqrt %102 : f32
    %104 = vector.broadcast %103 : f32 to vector<16x1xf32>
    %105 = arith.mulf %82, %104 : vector<16x1xf32>
    %106 = vector.broadcast %97 : f32 to vector<16x1xf32>
    %107 = arith.mulf %106, %105 : vector<16x1xf32>
    %108 = arith.subf %83, %107 : vector<16x1xf32>
    %109 = vector.broadcast %105 : vector<16x1xf32> to vector<16x128xf32>
    %110 = arith.mulf %78, %109 : vector<16x128xf32>
    %111 = vector.broadcast %108 : vector<16x1xf32> to vector<16x128xf32>
    %112 = arith.addf %110, %111 : vector<16x128xf32>
    %c0_50 = arith.constant 0 : index
    %c0_51 = arith.constant 0 : index
    %113 = vector.load %arg12[%c0_50, %c0_51] : memref<8x16xf32, #tpu.memory_space<vmem>>, vector<8x16xf32>
    %cst_52 = arith.constant dense<0.000000e+00> : vector<8x128xf32>
    %114 = tpu.matmul %113, %112, %cst_52 {dimension_numbers = #tpu.dot_dimension_numbers<[1], [0], [0], [1], [0, 0, 1, 1], [], []>} : vector<8x16xf32>, vector<16x128xf32>, vector<8x128xf32> -> vector<8x128xf32>
    %c0_53 = arith.constant 0 : index
    %c0_54 = arith.constant 0 : index
    %115 = vector.load %arg13[%c0_53, %c0_54] : memref<8x1xf32, #tpu.memory_space<vmem>>, vector<8x1xf32>
    %116 = vector.broadcast %115 : vector<8x1xf32> to vector<8x128xf32>
    %117 = arith.addf %114, %116 : vector<8x128xf32>
    %c0_55 = arith.constant 0 : index
    %c0_56 = arith.constant 0 : index
    %c0_57 = arith.constant 0 : index
    %118 = vector.load %arg14[%c0_55, %c0_56, %c0_57] : memref<1x8x128xf32, #tpu.memory_space<vmem>>, vector<1x8x128xf32>
    %119 = vector.shape_cast %118 : vector<1x8x128xf32> to vector<8x128xf32>
    %120 = vector.shape_cast %117 : vector<8x128xf32> to vector<1x8x128xf32>
    tpu.vector_store %arg14[%c0_55, %c0_56, %c0_57], %120 {strides = array<i32>} : memref<1x8x128xf32, #tpu.memory_space<vmem>>, vector<1x8x128xf32>,
    return
  }
  func.func @transform_0(%arg0: i32) -> i32 {
    %c0_i32 = arith.constant 0 : i32
    %c0_i32_0 = arith.constant 0 : i32
    return %c0_i32 : i32
  }
  func.func @transform_1(%arg0: i32) -> i32 {
    %c0_i32 = arith.constant 0 : i32
    %c0_i32_0 = arith.constant 0 : i32
    return %c0_i32 : i32
  }
  func.func @transform_2(%arg0: i32) -> (i32, i32, i32) {
    %c0_i32 = arith.constant 0 : i32
    %c0_i32_0 = arith.constant 0 : i32
    %c0_i32_1 = arith.constant 0 : i32
    return %arg0, %c0_i32, %c0_i32_0 : i32, i32, i32
  }
  func.func @transform_3(%arg0: i32) -> (i32, i32) {
    %c0_i32 = arith.constant 0 : i32
    %c0_i32_0 = arith.constant 0 : i32
    %c0_i32_1 = arith.constant 0 : i32
    return %c0_i32, %c0_i32_0 : i32, i32
  }
  func.func @transform_4(%arg0: i32) -> (i32, i32) {
    %c0_i32 = arith.constant 0 : i32
    %c0_i32_0 = arith.constant 0 : i32
    %c0_i32_1 = arith.constant 0 : i32
    return %c0_i32, %c0_i32_0 : i32, i32
  }
  func.func @transform_5(%arg0: i32) -> (i32, i32) {
    %c0_i32 = arith.constant 0 : i32
    %c0_i32_0 = arith.constant 0 : i32
    %c0_i32_1 = arith.constant 0 : i32
    return %c0_i32, %c0_i32_0 : i32, i32
  }
  func.func @transform_6(%arg0: i32) -> (i32, i32) {
    %c0_i32 = arith.constant 0 : i32
    %c0_i32_0 = arith.constant 0 : i32
    %c0_i32_1 = arith.constant 0 : i32
    return %c0_i32, %c0_i32_0 : i32, i32
  }
  func.func @transform_7(%arg0: i32) -> (i32, i32) {
    %c0_i32 = arith.constant 0 : i32
    %c0_i32_0 = arith.constant 0 : i32
    %c0_i32_1 = arith.constant 0 : i32
    return %c0_i32, %c0_i32_0 : i32, i32
  }
  func.func @transform_8(%arg0: i32) -> (i32, i32) {
    %c0_i32 = arith.constant 0 : i32
    %c0_i32_0 = arith.constant 0 : i32
    %c0_i32_1 = arith.constant 0 : i32
    return %c0_i32, %c0_i32_0 : i32, i32
  }
  func.func @transform_9(%arg0: i32) -> (i32, i32) {
    %c0_i32 = arith.constant 0 : i32
    %c0_i32_0 = arith.constant 0 : i32
    %c0_i32_1 = arith.constant 0 : i32
    return %c0_i32, %c0_i32_0 : i32, i32
  }
  func.func @transform_10(%arg0: i32) -> (i32, i32) {
    %c0_i32 = arith.constant 0 : i32
    %c0_i32_0 = arith.constant 0 : i32
    %c0_i32_1 = arith.constant 0 : i32
    return %c0_i32, %c0_i32_0 : i32, i32
  }
  func.func @transform_11(%arg0: i32) -> (i32, i32) {
    %c0_i32 = arith.constant 0 : i32
    %c0_i32_0 = arith.constant 0 : i32
    %c0_i32_1 = arith.constant 0 : i32
    return %c0_i32, %c0_i32_0 : i32, i32
  }
  func.func @transform_12(%arg0: i32) -> (i32, i32) {
    %c0_i32 = arith.constant 0 : i32
    %c0_i32_0 = arith.constant 0 : i32
    %c0_i32_1 = arith.constant 0 : i32
    return %c0_i32, %c0_i32_0 : i32, i32
  }
  func.func @transform_13(%arg0: i32) -> (i32, i32, i32) {
    %c0_i32 = arith.constant 0 : i32
    %c0_i32_0 = arith.constant 0 : i32
    %c0_i32_1 = arith.constant 0 : i32
    return %arg0, %c0_i32, %c0_i32_0 : i32, i32, i32
  }
}

</mosaic_0001>

<llo_original>
// kernel: tpu_custom_call.1
$region0: #{tpu_custom_call.1}
  #allocation0 [shape = 'u32[]', space=smem, size = 0x4, offset = 0x4, fixed_abs, tag = 'smem constant byte address 0x4 - core index']
  #allocation1 [shape = 'u32[144,128]{1,0:T(1,128)}', space=vmem, size = 0x12000, scoped, tag = 'internal scratch']
  #allocation2 [shape = 'f32[16,384]{1,0:T(8,128)}', space=vmem, size = 0x6000, scoped, tag = 'scratch operand']
  #allocation3 [shape = 'f32[1]{0:T(128)S(6)}', space=smem, size = 0x200, scoped, tag = 'scoped memory for tpu_custom_call.1']
  #allocation4 [shape = 'f32[1]{0:T(128)S(6)}', space=smem, size = 0x200, scoped, tag = 'scoped memory for tpu_custom_call.1']
  %s0 = inlined_call_operand.<no memory space> [shape: f32[1], index: 0, kind: input, shape index: {}]
  %s1 = inlined_call_operand.<no memory space> [shape: f32[1], index: 1, kind: input, shape index: {}]
  %s2 = inlined_call_operand.vmem [shape: f32[2,8,128], index: 2, kind: input, shape index: {}]
  %s3 = inlined_call_operand.vmem [shape: f32[16,8], index: 3, kind: input, shape index: {}]
  %s4 = inlined_call_operand.vmem [shape: f32[16,1], index: 4, kind: input, shape index: {}]
  %s5 = inlined_call_operand.vmem [shape: f32[16,1], index: 5, kind: input, shape index: {}]
  %s6 = inlined_call_operand.vmem [shape: f32[16,1], index: 6, kind: input, shape index: {}]
  %s7 = inlined_call_operand.vmem [shape: f32[16,3], index: 7, kind: input, shape index: {}]
  %s8 = inlined_call_operand.vmem [shape: f32[16,1], index: 8, kind: input, shape index: {}]
  %s9 = inlined_call_operand.vmem [shape: f32[16,1], index: 9, kind: input, shape index: {}]
  %s10 = inlined_call_operand.vmem [shape: f32[16,1], index: 10, kind: input, shape index: {}]
  %s11 = inlined_call_operand.vmem [shape: f32[8,16], index: 11, kind: input, shape index: {}]
  %s12 = inlined_call_operand.vmem [shape: f32[8,1], index: 12, kind: input, shape index: {}]
  %s13 = inlined_call_operand.hbm [shape: f32[2,8,128], index: 13, kind: output, shape index: {}]
  %s14 = sld [smem:[#allocation0]]
  $region85: #{tpu_custom_call.1} parent=0
    _
  %s16 = ssub.s32 1, %s14
  %s17 = scalar_select 0, %s16, %s14
  %18 = sst [smem:[#allocation3]] %s0
  %19 = sst [smem:[#allocation4]] %s1
  $region1: #{tpu_custom_call.1} parent=0
    #allocation5 [shape = 'u8[8192]{0}', space=vmem, size = 0x2000, scoped, tag = 'output window, operand 0']
    #allocation6 [shape = 's32[2]{0}', space=sflag, size = 0x8, scoped, tag = 'scoped memory for tpu_custom_call.1']
    %20 = vsyncpa [#allocation6], 0
    %s21 = scalar_lea.sflag [#allocation6], 1
    %22 = vsyncpa %s21, 0
    loop: start=0, step=1, limit=4
    $region2: #{tpu_custom_call.1} parent=1 // loop_pre_header
      _
    $region3: #{tpu_custom_call.1} parent=1 // loop_header
      %s24 = sphi 0, %s28
      %p25 = scmp.ge.s32.totalorder %s24, 4
      %s32 = sphi 0, %s32
      %s34 = sphi 0, %s32
      %s35 = sphi 0, %s34
      %s49 = sphi 0, %s35
      %s53 = sphi 0, %s53
      %s55 = sphi 0, %s53
      %s56 = sphi 0, %s55
      %s70 = sphi 0, %s56
      %s76 = sphi 0, %s78
      %s79 = sphi 0, %s76
      %s80 = sphi 0, %s79
      %s96 = sphi 0, %s80
      %s100 = sphi 0, %s100
      %s102 = sphi 0, %s100
      %s103 = sphi 0, %s102
      %s117 = sphi 0, %s103
      %s121 = sphi 0, %s121
      %s123 = sphi 0, %s121
      %s124 = sphi 0, %s123
      %s138 = sphi 0, %s124
      %s142 = sphi 0, %s142
      %s144 = sphi 0, %s142
      %s145 = sphi 0, %s144
      %s159 = sphi 0, %s145
      %s163 = sphi 0, %s163
      %s165 = sphi 0, %s163
      %s166 = sphi 0, %s165
      %s180 = sphi 0, %s166
      %s184 = sphi 0, %s184
      %s186 = sphi 0, %s184
      %s187 = sphi 0, %s186
      %s201 = sphi 0, %s187
      %s205 = sphi 0, %s205
      %s207 = sphi 0, %s205
      %s208 = sphi 0, %s207
      %s222 = sphi 0, %s208
      %s226 = sphi 0, %s226
      %s228 = sphi 0, %s226
      %s229 = sphi 0, %s228
      %s243 = sphi 0, %s229
      %s247 = sphi 0, %s247
      %s249 = sphi 0, %s247
      %s250 = sphi 0, %s249
      %s264 = sphi 0, %s250
      %s268 = sphi 0, %s268
      %s270 = sphi 0, %s268
      %s271 = sphi 0, %s270
      %s285 = sphi 0, %s271
      %s289 = sphi 0, %s289
      %s291 = sphi 0, %s289
      %s292 = sphi 0, %s291
      %s306 = sphi 0, %s292
      %s312 = sphi 0, %s314
      %s315 = sphi 0, %s312
      %s316 = sphi 0, %s315
      %s332 = sphi 0, %s316
    $region4: #{tpu_custom_call.1} parent=1 // loop_header_branch
      %27 = sbr.rel (%p25) target = $region8
    $region5: #{tpu_custom_call.1} parent=1 // loop_body
      %s29 = ssub.s32 %s24, 1
      %s30 = ssub.s32 %s24, 2
      %s31 = sadd.s32 %s24, 1
      %s33 = sadd.s32 %s32, 1
      %p36 = scmp.eq.s32.totalorder %s24, 1
      %p37 = scmp.ne.s32.totalorder %s32, %s34
      %p38 = scmp.eq.s32.totalorder %s24, 0
      %p39 = por %p37, %p38
      %p40 = scmp.ne.s32.totalorder %s32, %s34
      %p41 = scmp.eq.s32.totalorder %s29, 1
      %p42 = por %p40, %p41
      %p43 = scmp.ne.s32.totalorder %s34, %s35
      %p44 = scmp.eq.s32.totalorder %s29, 0
      %p45 = por %p43, %p44
      %p46 = scmp.ne.s32.totalorder %s34, %s35
      %p47 = scmp.eq.s32.totalorder %s30, 1
      %p48 = por %p46, %p47
      %p50 = scmp.ne.s32.totalorder %s35, %s49
      %p51 = scmp.eq.s32.totalorder %s30, 0
      %p52 = por %p50, %p51
      %s54 = sadd.s32 %s53, 1
      %p57 = scmp.eq.s32.totalorder %s24, 1
      %p58 = scmp.ne.s32.totalorder %s53, %s55
      %p59 = scmp.eq.s32.totalorder %s24, 0
      %p60 = por %p58, %p59
      %p61 = scmp.ne.s32.totalorder %s53, %s55
      %p62 = scmp.eq.s32.totalorder %s29, 1
      %p63 = por %p61, %p62
      %p64 = scmp.ne.s32.totalorder %s55, %s56
      %p65 = scmp.eq.s32.totalorder %s29, 0
      %p66 = por %p64, %p65
      %p67 = scmp.ne.s32.totalorder %s55, %s56
      %p68 = scmp.eq.s32.totalorder %s30, 1
      %p69 = por %p67, %p68
      %p71 = scmp.ne.s32.totalorder %s56, %s70
      %p72 = scmp.eq.s32.totalorder %s30, 0
      %p73 = por %p71, %p72
      %s74 = ssub.s32 %s24, %s31
      %p75 = scmp.eq.s32.totalorder %s74, 0
      %s77 = sadd.s32 %s76, 1
      %s78 = scalar_select %p75, %s76, %s77
      %p81 = pneg %p75
      %p82 = scmp.eq.s32.totalorder %s24, 1
      %p83 = por %p81, %p82
      %p84 = scmp.ne.s32.totalorder %s76, %s79
      %p85 = scmp.eq.s32.totalorder %s24, 0
      %p86 = por %p84, %p85
      %p87 = scmp.ne.s32.totalorder %s76, %s79
      %p88 = scmp.eq.s32.totalorder %s29, 1
      %p89 = por %p87, %p88
      %p90 = scmp.ne.s32.totalorder %s79, %s80
      %p91 = scmp.eq.s32.totalorder %s29, 0
      %p92 = por %p90, %p91
      %p93 = scmp.ne.s32.totalorder %s79, %s80
      %p94 = scmp.eq.s32.totalorder %s30, 1
      %p95 = por %p93, %p94
      %p97 = scmp.ne.s32.totalorder %s80, %s96
      %p98 = scmp.eq.s32.totalorder %s30, 0
      %p99 = por %p97, %p98
      %s101 = sadd.s32 %s100, 1
      %p104 = scmp.eq.s32.totalorder %s24, 1
      %p105 = scmp.ne.s32.totalorder %s100, %s102
      %p106 = scmp.eq.s32.totalorder %s24, 0
      %p107 = por %p105, %p106
      %p108 = scmp.ne.s32.totalorder %s100, %s102
      %p109 = scmp.eq.s32.totalorder %s29, 1
      %p110 = por %p108, %p109
      %p111 = scmp.ne.s32.totalorder %s102, %s103
      %p112 = scmp.eq.s32.totalorder %s29, 0
      %p113 = por %p111, %p112
      %p114 = scmp.ne.s32.totalorder %s102, %s103
      %p115 = scmp.eq.s32.totalorder %s30, 1
      %p116 = por %p114, %p115
      %p118 = scmp.ne.s32.totalorder %s103, %s117
      %p119 = scmp.eq.s32.totalorder %s30, 0
      %p120 = por %p118, %p119
      %s122 = sadd.s32 %s121, 1
      %p125 = scmp.eq.s32.totalorder %s24, 1
      %p126 = scmp.ne.s32.totalorder %s121, %s123
      %p127 = scmp.eq.s32.totalorder %s24, 0
      %p128 = por %p126, %p127
      %p129 = scmp.ne.s32.totalorder %s121, %s123
      %p130 = scmp.eq.s32.totalorder %s29, 1
      %p131 = por %p129, %p130
      %p132 = scmp.ne.s32.totalorder %s123, %s124
      %p133 = scmp.eq.s32.totalorder %s29, 0
      %p134 = por %p132, %p133
      %p135 = scmp.ne.s32.totalorder %s123, %s124
      %p136 = scmp.eq.s32.totalorder %s30, 1
      %p137 = por %p135, %p136
      %p139 = scmp.ne.s32.totalorder %s124, %s138
      %p140 = scmp.eq.s32.totalorder %s30, 0
      %p141 = por %p139, %p140
      %s143 = sadd.s32 %s142, 1
      %p146 = scmp.eq.s32.totalorder %s24, 1
      %p147 = scmp.ne.s32.totalorder %s142, %s144
      %p148 = scmp.eq.s32.totalorder %s24, 0
      %p149 = por %p147, %p148
      %p150 = scmp.ne.s32.totalorder %s142, %s144
      %p151 = scmp.eq.s32.totalorder %s29, 1
      %p152 = por %p150, %p151
      %p153 = scmp.ne.s32.totalorder %s144, %s145
      %p154 = scmp.eq.s32.totalorder %s29, 0
      %p155 = por %p153, %p154
      %p156 = scmp.ne.s32.totalorder %s144, %s145
      %p157 = scmp.eq.s32.totalorder %s30, 1
      %p158 = por %p156, %p157
      %p160 = scmp.ne.s32.totalorder %s145, %s159
      %p161 = scmp.eq.s32.totalorder %s30, 0
      %p162 = por %p160, %p161
      %s164 = sadd.s32 %s163, 1
      %p167 = scmp.eq.s32.totalorder %s24, 1
      %p168 = scmp.ne.s32.totalorder %s163, %s165
      %p169 = scmp.eq.s32.totalorder %s24, 0
      %p170 = por %p168, %p169
      %p171 = scmp.ne.s32.totalorder %s163, %s165
      %p172 = scmp.eq.s32.totalorder %s29, 1
      %p173 = por %p171, %p172
      %p174 = scmp.ne.s32.totalorder %s165, %s166
      %p175 = scmp.eq.s32.totalorder %s29, 0
      %p176 = por %p174, %p175
      %p177 = scmp.ne.s32.totalorder %s165, %s166
      %p178 = scmp.eq.s32.totalorder %s30, 1
      %p179 = por %p177, %p178
      %p181 = scmp.ne.s32.totalorder %s166, %s180
      %p182 = scmp.eq.s32.totalorder %s30, 0
      %p183 = por %p181, %p182
      %s185 = sadd.s32 %s184, 1
      %p188 = scmp.eq.s32.totalorder %s24, 1
      %p189 = scmp.ne.s32.totalorder %s184, %s186
      %p190 = scmp.eq.s32.totalorder %s24, 0
      %p191 = por %p189, %p190
      %p192 = scmp.ne.s32.totalorder %s184, %s186
      %p193 = scmp.eq.s32.totalorder %s29, 1
      %p194 = por %p192, %p193
      %p195 = scmp.ne.s32.totalorder %s186, %s187
      %p196 = scmp.eq.s32.totalorder %s29, 0
      %p197 = por %p195, %p196
      %p198 = scmp.ne.s32.totalorder %s186, %s187
      %p199 = scmp.eq.s32.totalorder %s30, 1
      %p200 = por %p198, %p199
      %p202 = scmp.ne.s32.totalorder %s187, %s201
      %p203 = scmp.eq.s32.totalorder %s30, 0
      %p204 = por %p202, %p203
      %s206 = sadd.s32 %s205, 1
      %p209 = scmp.eq.s32.totalorder %s24, 1
      %p210 = scmp.ne.s32.totalorder %s205, %s207
      %p211 = scmp.eq.s32.totalorder %s24, 0
      %p212 = por %p210, %p211
      %p213 = scmp.ne.s32.totalorder %s205, %s207
      %p214 = scmp.eq.s32.totalorder %s29, 1
      %p215 = por %p213, %p214
      %p216 = scmp.ne.s32.totalorder %s207, %s208
      %p217 = scmp.eq.s32.totalorder %s29, 0
      %p218 = por %p216, %p217
      %p219 = scmp.ne.s32.totalorder %s207, %s208
      %p220 = scmp.eq.s32.totalorder %s30, 1
      %p221 = por %p219, %p220
      %p223 = scmp.ne.s32.totalorder %s208, %s222
      %p224 = scmp.eq.s32.totalorder %s30, 0
      %p225 = por %p223, %p224
      %s227 = sadd.s32 %s226, 1
      %p230 = scmp.eq.s32.totalorder %s24, 1
      %p231 = scmp.ne.s32.totalorder %s226, %s228
      %p232 = scmp.eq.s32.totalorder %s24, 0
      %p233 = por %p231, %p232
      %p234 = scmp.ne.s32.totalorder %s226, %s228
      %p235 = scmp.eq.s32.totalorder %s29, 1
      %p236 = por %p234, %p235
      %p237 = scmp.ne.s32.totalorder %s228, %s229
      %p238 = scmp.eq.s32.totalorder %s29, 0
      %p239 = por %p237, %p238
      %p240 = scmp.ne.s32.totalorder %s228, %s229
      %p241 = scmp.eq.s32.totalorder %s30, 1
      %p242 = por %p240, %p241
      %p244 = scmp.ne.s32.totalorder %s229, %s243
      %p245 = scmp.eq.s32.totalorder %s30, 0
      %p246 = por %p244, %p245
      %s248 = sadd.s32 %s247, 1
      %p251 = scmp.eq.s32.totalorder %s24, 1
      %p252 = scmp.ne.s32.totalorder %s247, %s249
      %p253 = scmp.eq.s32.totalorder %s24, 0
      %p254 = por %p252, %p253
      %p255 = scmp.ne.s32.totalorder %s247, %s249
      %p256 = scmp.eq.s32.totalorder %s29, 1
      %p257 = por %p255, %p256
      %p258 = scmp.ne.s32.totalorder %s249, %s250
      %p259 = scmp.eq.s32.totalorder %s29, 0
      %p260 = por %p258, %p259
      %p261 = scmp.ne.s32.totalorder %s249, %s250
      %p262 = scmp.eq.s32.totalorder %s30, 1
      %p263 = por %p261, %p262
      %p265 = scmp.ne.s32.totalorder %s250, %s264
      %p266 = scmp.eq.s32.totalorder %s30, 0
      %p267 = por %p265, %p266
      %s269 = sadd.s32 %s268, 1
      %p272 = scmp.eq.s32.totalorder %s24, 1
      %p273 = scmp.ne.s32.totalorder %s268, %s270
      %p274 = scmp.eq.s32.totalorder %s24, 0
      %p275 = por %p273, %p274
      %p276 = scmp.ne.s32.totalorder %s268, %s270
      %p277 = scmp.eq.s32.totalorder %s29, 1
      %p278 = por %p276, %p277
      %p279 = scmp.ne.s32.totalorder %s270, %s271
      %p280 = scmp.eq.s32.totalorder %s29, 0
      %p281 = por %p279, %p280
      %p282 = scmp.ne.s32.totalorder %s270, %s271
      %p283 = scmp.eq.s32.totalorder %s30, 1
      %p284 = por %p282, %p283
      %p286 = scmp.ne.s32.totalorder %s271, %s285
      %p287 = scmp.eq.s32.totalorder %s30, 0
      %p288 = por %p286, %p287
      %s290 = sadd.s32 %s289, 1
      %p293 = scmp.eq.s32.totalorder %s24, 1
      %p294 = scmp.ne.s32.totalorder %s289, %s291
      %p295 = scmp.eq.s32.totalorder %s24, 0
      %p296 = por %p294, %p295
      %p297 = scmp.ne.s32.totalorder %s289, %s291
      %p298 = scmp.eq.s32.totalorder %s29, 1
      %p299 = por %p297, %p298
      %p300 = scmp.ne.s32.totalorder %s291, %s292
      %p301 = scmp.eq.s32.totalorder %s29, 0
      %p302 = por %p300, %p301
      %p303 = scmp.ne.s32.totalorder %s291, %s292
      %p304 = scmp.eq.s32.totalorder %s30, 1
      %p305 = por %p303, %p304
      %p307 = scmp.ne.s32.totalorder %s292, %s306
      %p308 = scmp.eq.s32.totalorder %s30, 0
      %p309 = por %p307, %p308
      %s310 = ssub.s32 %s24, %s31
      %p311 = scmp.eq.s32.totalorder %s310, 0
      %s313 = sadd.s32 %s312, 1
      %s314 = scalar_select %p311, %s312, %s313
      %p317 = pneg %p311
      %p318 = scmp.eq.s32.totalorder %s24, 1
      %p319 = por %p317, %p318
      %p320 = scmp.ne.s32.totalorder %s312, %s315
      %p321 = scmp.eq.s32.totalorder %s24, 0
      %p322 = por %p320, %p321
      %p323 = scmp.ne.s32.totalorder %s312, %s315
      %p324 = scmp.eq.s32.totalorder %s29, 1
      %p325 = por %p323, %p324
      %p326 = scmp.ne.s32.totalorder %s315, %s316
      %p327 = scmp.eq.s32.totalorder %s29, 0
      %p328 = por %p326, %p327
      %p329 = scmp.ne.s32.totalorder %s315, %s316
      %p330 = scmp.eq.s32.totalorder %s30, 1
      %p331 = por %p329, %p330
      %p333 = scmp.ne.s32.totalorder %s316, %s332
      %p334 = scmp.eq.s32.totalorder %s30, 0
      %p335 = por %p333, %p334
      %p336 = scmp.le.s32.totalorder 1, %s24
      %p337 = scmp.lt.s32.totalorder %s24, 3
      %p338 = pnand %p336, %p337
      %p339 = pneg %p338
      // Predicated region
      $region9: #{tpu_custom_call.1} parent=5 // pred_check
        _
      $region10: #{tpu_custom_call.1} parent=5 // pred_check_branch
        %341 = sbr.rel (%p338) target = $region12
      $region11: #{tpu_custom_call.1} parent=5 // pred_region
        %s342 = ssub.s32 %s24, 1
        // Predicated region
        $region13: #{tpu_custom_call.1} parent=11 // pred_check
          %p343 = pneg %p45
        $region14: #{tpu_custom_call.1} parent=11 // pred_check_branch
          %345 = sbr.rel (%p343) target = $region16
        $region15: #{tpu_custom_call.1} parent=11 // pred_region
          _
        $region16: #{tpu_custom_call.1} parent=11 // pred_fallthru
          _
        // Predicated region
        $region17: #{tpu_custom_call.1} parent=11 // pred_check
          %p346 = pneg %p66
        $region18: #{tpu_custom_call.1} parent=11 // pred_check_branch
          %348 = sbr.rel (%p346) target = $region20
        $region19: #{tpu_custom_call.1} parent=11 // pred_region
          _
        $region20: #{tpu_custom_call.1} parent=11 // pred_fallthru
          _
        // Predicated region
        $region21: #{tpu_custom_call.1} parent=11 // pred_check
          %p349 = pneg %p113
        $region22: #{tpu_custom_call.1} parent=11 // pred_check_branch
          %351 = sbr.rel (%p349) target = $region24
        $region23: #{tpu_custom_call.1} parent=11 // pred_region
          _
        $region24: #{tpu_custom_call.1} parent=11 // pred_fallthru
          _
        // Predicated region
        $region25: #{tpu_custom_call.1} parent=11 // pred_check
          %p352 = pneg %p134
        $region26: #{tpu_custom_call.1} parent=11 // pred_check_branch
          %354 = sbr.rel (%p352) target = $region28
        $region27: #{tpu_custom_call.1} parent=11 // pred_region
          _
        $region28: #{tpu_custom_call.1} parent=11 // pred_fallthru
          _
        // Predicated region
        $region29: #{tpu_custom_call.1} parent=11 // pred_check
          %p355 = pneg %p155
        $region30: #{tpu_custom_call.1} parent=11 // pred_check_branch
          %357 = sbr.rel (%p355) target = $region32
        $region31: #{tpu_custom_call.1} parent=11 // pred_region
          _
        $region32: #{tpu_custom_call.1} parent=11 // pred_fallthru
          _
        // Predicated region
        $region33: #{tpu_custom_call.1} parent=11 // pred_check
          %p358 = pneg %p176
        $region34: #{tpu_custom_call.1} parent=11 // pred_check_branch
          %360 = sbr.rel (%p358) target = $region36
        $region35: #{tpu_custom_call.1} parent=11 // pred_region
          _
        $region36: #{tpu_custom_call.1} parent=11 // pred_fallthru
          _
        // Predicated region
        $region37: #{tpu_custom_call.1} parent=11 // pred_check
          %p361 = pneg %p197
        $region38: #{tpu_custom_call.1} parent=11 // pred_check_branch
          %363 = sbr.rel (%p361) target = $region40
        $region39: #{tpu_custom_call.1} parent=11 // pred_region
          _
        $region40: #{tpu_custom_call.1} parent=11 // pred_fallthru
          _
        // Predicated region
        $region41: #{tpu_custom_call.1} parent=11 // pred_check
          %p364 = pneg %p218
        $region42: #{tpu_custom_call.1} parent=11 // pred_check_branch
          %366 = sbr.rel (%p364) target = $region44
        $region43: #{tpu_custom_call.1} parent=11 // pred_region
          _
        $region44: #{tpu_custom_call.1} parent=11 // pred_fallthru
          _
        // Predicated region
        $region45: #{tpu_custom_call.1} parent=11 // pred_check
          %p367 = pneg %p239
        $region46: #{tpu_custom_call.1} parent=11 // pred_check_branch
          %369 = sbr.rel (%p367) target = $region48
        $region47: #{tpu_custom_call.1} parent=11 // pred_region
          _
        $region48: #{tpu_custom_call.1} parent=11 // pred_fallthru
          _
        // Predicated region
        $region49: #{tpu_custom_call.1} parent=11 // pred_check
          %p370 = pneg %p260
        $region50: #{tpu_custom_call.1} parent=11 // pred_check_branch
          %372 = sbr.rel (%p370) target = $region52
        $region51: #{tpu_custom_call.1} parent=11 // pred_region
          _
        $region52: #{tpu_custom_call.1} parent=11 // pred_fallthru
          _
        // Predicated region
        $region53: #{tpu_custom_call.1} parent=11 // pred_check
          %p373 = pneg %p281
        $region54: #{tpu_custom_call.1} parent=11 // pred_check_branch
          %375 = sbr.rel (%p373) target = $region56
        $region55: #{tpu_custom_call.1} parent=11 // pred_region
          _
        $region56: #{tpu_custom_call.1} parent=11 // pred_fallthru
          _
        // Predicated region
        $region57: #{tpu_custom_call.1} parent=11 // pred_check
          %p376 = pneg %p302
        $region58: #{tpu_custom_call.1} parent=11 // pred_check_branch
          %378 = sbr.rel (%p376) target = $region60
        $region59: #{tpu_custom_call.1} parent=11 // pred_region
          _
        $region60: #{tpu_custom_call.1} parent=11 // pred_fallthru
          _
      $region12: #{tpu_custom_call.1} parent=5 // pred_fallthru
        _
      %p379 = scmp.lt.s32.totalorder %s24, 2
      // Predicated region
      $region61: #{tpu_custom_call.1} parent=5 // pred_check
        %p380 = pneg %p379
      $region62: #{tpu_custom_call.1} parent=5 // pred_check_branch
        %382 = sbr.rel (%p380) target = $region64
      $region63: #{tpu_custom_call.1} parent=5 // pred_region
        // Predicated region
        $region65: #{tpu_custom_call.1} parent=63 // pred_check
          %p383 = pneg %p86
        $region66: #{tpu_custom_call.1} parent=63 // pred_check_branch
          %385 = sbr.rel (%p383) target = $region68
        $region67: #{tpu_custom_call.1} parent=63 // pred_region
          %p386 = scmp.lt.s32.totalorder %s24, 1
          %s387 = scalar_select %p386, %s24, 1
          %s388 = smul.addr %s387, 8
          %s389 = scalar_lea.vmem %s2, %s388
        $region68: #{tpu_custom_call.1} parent=63 // pred_fallthru
          _
      $region64: #{tpu_custom_call.1} parent=5 // pred_fallthru
        _
      %p390 = scmp.le.s32.totalorder 1, %s24
      %p391 = scmp.lt.s32.totalorder %s24, 3
      %p392 = pnand %p390, %p391
      %p393 = pneg %p392
      // Predicated region
      $region69: #{tpu_custom_call.1} parent=5 // pred_check
        _
      $region70: #{tpu_custom_call.1} parent=5 // pred_check_branch
        %395 = sbr.rel (%p392) target = $region72
      $region71: #{tpu_custom_call.1} parent=5 // pred_region
        %s396 = ssub.s32 %s24, 1
        %p397 = pneg %p45
        %p398 = pneg %p42
        %p399 = pneg %p66
        %p400 = pneg %p63
        %p401 = scmp.lt.s32.totalorder %s29, 1
        %s402 = scalar_select %p401, %s29, 1
        %s403 = smul.addr %s402, 8
        %s404 = scalar_lea.vmem %s2, %s403
        %p405 = pneg %p92
        %p406 = pneg %p89
        %p407 = pneg %p113
        %p408 = pneg %p110
        %p409 = pneg %p134
        %p410 = pneg %p131
        %p411 = pneg %p155
        %p412 = pneg %p152
        %p413 = pneg %p176
        %p414 = pneg %p173
        %p415 = pneg %p197
        %p416 = pneg %p194
        %p417 = pneg %p218
        %p418 = pneg %p215
        %p419 = pneg %p239
        %p420 = pneg %p236
        %p421 = pneg %p260
        %p422 = pneg %p257
        %p423 = pneg %p281
        %p424 = pneg %p278
        %p425 = pneg %p302
        %p426 = pneg %p299
        %p427 = pneg %p328
        %p428 = pneg %p325
        %s429 = sand.u32 %s315, 1
        %s430 = scalar_lea.sflag [#allocation6], %s429
        %s431 = sand.u32 %s315, 1
        %s432 = smul.addr %s431, 8
        %s433 = scalar_lea.vmem [#allocation5], %s432
        %p434 = scmp.lt.s32.totalorder %s29, 1
        %s435 = scalar_select %p434, %s29, 1
        %s436 = smul.addr %s435, 8
        %s437 = scalar_lea.vmem %s2, %s436
        %v438 = vld [vmem:[%s437] sm:$0xff]
        %v439 = vlaneseq
        %v440 = vand.u32 %v439, 127
        %vm441 = vcmp.lt.s32.totalorder %v440, 32
        %v442 = vld [vmem:[%s3] sm:$0xff]
        %v443 = vld [vmem:[%s3 + $0x8] sm:$0xff]
        %v444 = vld [vmem:[%s4] sm:$0xff]
        %v445 = vld [vmem:[%s4 + $0x8] sm:$0xff]
        %447 = vset.pattern.permute.xlu0 0
        %448 = vperm.xlu0 %447, %v444
        %v449 = vpop.permute.xlu0 %448
        %452 = vset.pattern.permute.xlu0 0
        %453 = vperm.xlu0 %452, %v445
        %v454 = vpop.permute.xlu0 %453
        %vm456 = vcmask 64512
        %v458 = vsel %vm456, %v442, 0
        %v461 = vsel %vm456, %v443, 0
        %463 = vmatprep.subr.mxu0 0.0
        %464 = vmatpush1.msra.mxu0 %v438
        %465 = vmatprep.subr.mxu0 0.0
        %466 = vmatpush1.msra.mxu0 0.0
        %467 = vmatprep.subr.mxu0 0.0
        %468 = vmatpush1.msra.mxu0 0.0
        %469 = vmatprep.subr.mxu0 0.0
        %470 = vmatpush1.msra.mxu0 0.0
        %471 = vmatprep.subr.mxu0 0.0
        %472 = vmatpush1.msra.mxu0 0.0
        %473 = vmatprep.subr.mxu0 0.0
        %474 = vmatpush1.msra.mxu0 0.0
        %475 = vmatprep.subr.mxu0 0.0
        %476 = vmatpush1.msra.mxu0 0.0
        %477 = vmatprep.subr.mxu0 0.0
        %478 = vmatpush1.msra.mxu0 0.0
        %479 = vmatprep.subr.mxu0 0.0
        %480 = vmatpush1.msra.mxu0 0.0
        %481 = vmatprep.subr.mxu0 0.0
        %482 = vmatpush1.msra.mxu0 0.0
        %483 = vmatprep.subr.mxu0 0.0
        %484 = vmatpush1.msra.mxu0 0.0
        %485 = vmatprep.subr.mxu0 0.0
        %486 = vmatpush1.msra.mxu0 0.0
        %487 = vmatprep.subr.mxu0 0.0
        %488 = vmatpush1.msra.mxu0 0.0
        %489 = vmatprep.subr.mxu0 0.0
        %490 = vmatpush1.msra.mxu0 0.0
        %491 = vmatprep.subr.mxu0 0.0
        %492 = vmatpush1.msra.mxu0 0.0
        %493 = vmatprep.subr.mxu0 0.0
        %494 = vmatpush1.msra.mxu0 0.0
        %495 = vmatprep.subr.mxu0 0.0
        %496 = vmatpush1.msra.mxu0 0.0
        %497 = vmatprep.subr.mxu0 0.0
        %498 = vmatpush1.msra.mxu0 0.0
        %499 = vmatprep.subr.mxu0 0.0
        %500 = vmatpush1.msra.mxu0 0.0
        %501 = vmatprep.subr.mxu0 0.0
        %502 = vmatpush1.msra.mxu0 0.0
        %503 = vmatprep.subr.mxu0 0.0
        %504 = vmatpush1.msra.mxu0 0.0
        %505 = vmatprep.subr.mxu0 0.0
        %506 = vmatpush1.msra.mxu0 0.0
        %507 = vmatprep.subr.mxu0 0.0
        %508 = vmatpush1.msra.mxu0 0.0
        %509 = vmatprep.subr.mxu0 0.0
        %510 = vmatpush1.msra.mxu0 0.0
        %511 = vmatprep.subr.mxu0 0.0
        %512 = vmatpush1.msra.mxu0 0.0
        %513 = vmatprep.subr.mxu0 0.0
        %514 = vmatpush1.msra.mxu0 0.0
        %515 = vmatprep.subr.mxu0 0.0
        %516 = vmatpush1.msra.mxu0 0.0
        %517 = vmatprep.subr.mxu0 0.0
        %518 = vmatpush1.msra.mxu0 0.0
        %519 = vmatprep.subr.mxu0 0.0
        %520 = vmatpush1.msra.mxu0 0.0
        %521 = vmatprep.subr.mxu0 0.0
        %522 = vmatpush1.msra.mxu0 0.0
        %523 = vmatprep.subr.mxu0 0.0
        %524 = vmatpush1.msra.mxu0 0.0
        %525 = vmatprep.subr.mxu0 0.0
        %526 = vmatpush1.msra.mxu0 0.0
        %527 = vmatprep.mubr.f32.mxu0 0.0
        %528 = vmatmul.mubr.f32.gmra.mrb[0].mxu0 %v458
        %v529 = vpop.f32.mrb[0].mxu0
        %v530 = vadd.f32 %v449, %v529
        %v531 = vpop.f32.mrb[0].mxu0
        %532 = vmatprep.mubr.f32.mxu0 0.0
        %533 = vmatmul.mubr.f32.gmra.mrb[0].mxu0 %v461
        %v534 = vpop.f32.mrb[0].mxu0
        %v535 = vadd.f32 %v454, %v534
        %v536 = vpop.f32.mrb[0].mxu0
        %537 = vdwg.mxu0
        %s538 = sld [smem:[#allocation3]]
        %vm539 = vcmp.ge.f32.partialorder %v530, 0.0
        %vm540 = vcmp.ge.f32.partialorder %v535, 0.0
        %v541 = vstv %s538
        %v542 = vmul.f32 %v541, %v530
        %v543 = vmul.f32 %v541, %v535
        %v544 = vsel %vm539, %v530, %v542
        %v545 = vsel %vm540, %v535, %v543
        %v546 = vld [vmem:[%s5] sm:$0xff]
        %v547 = vld [vmem:[%s5 + $0x8] sm:$0xff]
        %v548 = vld [vmem:[%s6] sm:$0xff]
        %v549 = vld [vmem:[%s6 + $0x8] sm:$0xff]
        %v550 = vsel %vm441, 1, 0
        %vm551 = vcmp.eq.s32.totalorder %v550, 1
        %v552 = vsel %vm551, %v544, 0.0
        %v553 = vsel %vm551, %v545, 0.0
        %v554 = vadd.f32 %v552, %v553
        %555 = vadd.xlane.f32.xlu0 %v554
        %v556 = vpop.xlane.xlu0 %555
        %v557 = vrot.slane %v556, 4
        %v558 = vadd.f32 %v556, %v557
        %v559 = vrot.slane %v558, 2
        %v560 = vadd.f32 %v558, %v559
        %v561 = vrot.slane %v560, 1
        %v562 = vadd.f32 %v560, %v561
        %s563 = vtos %v562
        %v564 = vmul.f32 %v552, %v552
        %v565 = vmul.f32 %v553, %v553
        %v566 = vadd.f32 %v564, %v565
        %567 = vadd.xlane.f32.xlu0 %v566
        %v568 = vpop.xlane.xlu0 %567
        %v569 = vrot.slane %v568, 4
        %v570 = vadd.f32 %v568, %v569
        %v571 = vrot.slane %v570, 2
        %v572 = vadd.f32 %v570, %v571
        %v573 = vrot.slane %v572, 1
        %v574 = vadd.f32 %v572, %v573
        %s575 = vtos %v574
        %s576 = smul.f32 %s563, 0.001953125
        %s577 = smul.f32 %s575, 0.001953125
        %s578 = smul.f32 %s576, %s576
        %s579 = ssub.f32 %s577, %s578
        %s580 = smax.f32 %s579, 0.0
        %s581 = sadd.f32 %s580, 1e-08
        %v582 = vstv %s581
        %v583 = vrsqrt.pop %v582
        %s584 = vtos %v583
        %v585 = vstv %s584
        %v586 = vmul.f32 %v546, %v585
        %v587 = vmul.f32 %v547, %v585
        %v588 = vstv %s576
        %v589 = vmul.f32 %v588, %v586
        %v590 = vmul.f32 %v588, %v587
        %v591 = vsub.f32 %v548, %v589
        %v592 = vsub.f32 %v549, %v590
        %594 = vset.pattern.permute.xlu0 0
        %595 = vperm.xlu0 %594, %v586
        %v596 = vpop.permute.xlu0 %595
        %599 = vset.pattern.permute.xlu0 0
        %600 = vperm.xlu0 %599, %v587
        %v601 = vpop.permute.xlu0 %600
        %v603 = vmul.f32 %v544, %v596
        %v604 = vmul.f32 %v545, %v601
        %606 = vset.pattern.permute.xlu0 0
        %607 = vperm.xlu0 %606, %v591
        %v608 = vpop.permute.xlu0 %607
        %611 = vset.pattern.permute.xlu0 0
        %612 = vperm.xlu0 %611, %v592
        %v613 = vpop.permute.xlu0 %612
        %v615 = vadd.f32 %v603, %v608
        %v616 = vadd.f32 %v604, %v613
        %617 = vst [vmem:[#allocation2] sm:$0xff] 0.0
        %618 = vst [vmem:[#allocation2 + $0x18] sm:$0xff] 0.0
        %619 = vst [vmem:[#allocation2 + $0x10] sm:$0xff] 0.0
        %620 = vst [vmem:[#allocation2 + $0x28] sm:$0xff] 0.0
        %v621 = vsel %vm551, %v615, 0.0
        %v622 = vsel %vm551, %v616, 0.0
        %623 = vst [vmem:[#allocation2 + $0x8] sm:$0xff] %v621
        %624 = vst [vmem:[#allocation2 + $0x20] sm:$0xff] %v622
        %v625 = vld [vmem:[%s8] sm:$0xff]
        %v626 = vld [vmem:[%s8 + $0x8] sm:$0xff]
        %v627 = vld [vmem:[%s7] sm:$0xff]
        %v628 = vld [vmem:[%s7 + $0x8] sm:$0xff]
        %v629 = vld [vmem:[#allocation2] sm:$0xff]
        %v630 = vld [vmem:[#allocation2 + $0x8] sm:$0xff]
        %v631 = vld [vmem:[#allocation2 + $0x18] sm:$0xff]
        %v632 = vld [vmem:[#allocation2 + $0x20] sm:$0xff]
        %634 = vset.pattern.permute.xlu0 0
        %635 = vperm.xlu0 %634, %v627
        %v636 = vpop.permute.xlu0 %635
        %639 = vset.pattern.permute.xlu0 0
        %640 = vperm.xlu0 %639, %v628
        %v641 = vpop.permute.xlu0 %640
        %v643 = vmul.f32 %v636, %v629
        %v644 = vmul.f32 %v636, %v630
        %v645 = vmul.f32 %v641, %v631
        %v646 = vmul.f32 %v641, %v632
        %648 = vset.pattern.permute.xlu0 0
        %649 = vperm.xlu0 %648, %v625
        %v650 = vpop.permute.xlu0 %649
        %653 = vset.pattern.permute.xlu0 0
        %654 = vperm.xlu0 %653, %v626
        %v655 = vpop.permute.xlu0 %654
        %v657 = vadd.f32 %v650, %v643
        %v658 = vadd.f32 %v650, %v644
        %v659 = vadd.f32 %v655, %v645
        %v660 = vadd.f32 %v655, %v646
        %661 = vset.pattern.permute.xlu0 1
        %662 = vperm.xlu0 %661, %v627
        %v663 = vpop.permute.xlu0 %662
        %665 = vset.pattern.permute.xlu0 1
        %666 = vperm.xlu0 %665, %v628
        %v667 = vpop.permute.xlu0 %666
        %v669 = vmul.f32 %v663, %v630
        %v670 = vmul.f32 %v667, %v632
        %673 = vrot.lane.b32.xlu0 %v669, 126
        %v674 = vpop.permute.xlu0 %673
        %675 = vrot.lane.b32.xlu0 %v670, 126
        %v676 = vpop.permute.xlu0 %675
        %v679 = vadd.f32 %v657, %v674
        %v680 = vadd.f32 %v658, %v674
        %v681 = vadd.f32 %v659, %v676
        %v682 = vadd.f32 %v660, %v676
        %v683 = vld [vmem:[#allocation2 + $0x8] sm:$0xff]
        %v684 = vld [vmem:[#allocation2 + $0x10] sm:$0xff]
        %v685 = vld [vmem:[#allocation2 + $0x20] sm:$0xff]
        %v686 = vld [vmem:[#allocation2 + $0x28] sm:$0xff]
        %687 = vset.pattern.permute.xlu0 2
        %688 = vperm.xlu0 %687, %v627
        %v689 = vpop.permute.xlu0 %688
        %691 = vset.pattern.permute.xlu0 2
        %692 = vperm.xlu0 %691, %v628
        %v693 = vpop.permute.xlu0 %692
        %v695 = vmul.f32 %v689, %v683
        %v696 = vmul.f32 %v689, %v684
        %v697 = vmul.f32 %v693, %v685
        %v698 = vmul.f32 %v693, %v686
        %703 = vrot.lane.b32.xlu0 %v695, 124
        %v704 = vpop.permute.xlu0 %703
        %705 = vrot.lane.b32.xlu0 %v696, 124
        %v706 = vpop.permute.xlu0 %705
        %707 = vrot.lane.b32.xlu0 %v697, 124
        %v708 = vpop.permute.xlu0 %707
        %709 = vrot.lane.b32.xlu0 %v698, 124
        %v710 = vpop.permute.xlu0 %709
        %vm711 = vcmask 1014784
        %v712 = vsel %vm711, %v704, %v706
        %v713 = vsel %vm711, %v708, %v710
        %v718 = vadd.f32 %v679, %v704
        %v719 = vadd.f32 %v680, %v712
        %v720 = vadd.f32 %v681, %v708
        %v721 = vadd.f32 %v682, %v713
        %s722 = sld [smem:[#allocation4]]
        %vm723 = vcmp.ge.f32.partialorder %v718, 0.0
        %vm724 = vcmp.ge.f32.partialorder %v719, 0.0
        %vm725 = vcmp.ge.f32.partialorder %v720, 0.0
        %vm726 = vcmp.ge.f32.partialorder %v721, 0.0
        %v727 = vstv %s722
        %v728 = vmul.f32 %v727, %v718
        %v729 = vmul.f32 %v727, %v719
        %v730 = vmul.f32 %v727, %v720
        %v731 = vmul.f32 %v727, %v721
        %v732 = vsel %vm723, %v718, %v728
        %v733 = vsel %vm724, %v719, %v729
        %v734 = vsel %vm725, %v720, %v730
        %v735 = vsel %vm726, %v721, %v731
        %v736 = vld [vmem:[%s9] sm:$0xff]
        %v737 = vld [vmem:[%s9 + $0x8] sm:$0xff]
        %v738 = vld [vmem:[%s10] sm:$0xff]
        %v739 = vld [vmem:[%s10 + $0x8] sm:$0xff]
        %744 = vrot.lane.b32.xlu0 %v732, 2
        %v745 = vpop.permute.xlu0 %744
        %746 = vrot.lane.b32.xlu0 %v733, 2
        %v747 = vpop.permute.xlu0 %746
        %748 = vrot.lane.b32.xlu0 %v734, 2
        %v749 = vpop.permute.xlu0 %748
        %750 = vrot.lane.b32.xlu0 %v735, 2
        %v751 = vpop.permute.xlu0 %750
        %vm752 = vcmask 15360
        %v753 = vsel %vm752, %v745, %v747
        %v754 = vsel %vm752, %v749, %v751
        %v757 = vsel %vm551, %v753, 0.0
        %v758 = vsel %vm551, %v754, 0.0
        %v759 = vadd.f32 %v757, %v758
        %760 = vadd.xlane.f32.xlu0 %v759
        %v761 = vpop.xlane.xlu0 %760
        %v762 = vrot.slane %v761, 4
        %v763 = vadd.f32 %v761, %v762
        %v764 = vrot.slane %v763, 2
        %v765 = vadd.f32 %v763, %v764
        %v766 = vrot.slane %v765, 1
        %v767 = vadd.f32 %v765, %v766
        %s768 = vtos %v767
        %v769 = vmul.f32 %v757, %v757
        %v770 = vmul.f32 %v758, %v758
        %v771 = vadd.f32 %v769, %v770
        %772 = vadd.xlane.f32.xlu0 %v771
        %v773 = vpop.xlane.xlu0 %772
        %v774 = vrot.slane %v773, 4
        %v775 = vadd.f32 %v773, %v774
        %v776 = vrot.slane %v775, 2
        %v777 = vadd.f32 %v775, %v776
        %v778 = vrot.slane %v777, 1
        %v779 = vadd.f32 %v777, %v778
        %s780 = vtos %v779
        %s781 = smul.f32 %s768, 0.001953125
        %s782 = smul.f32 %s780, 0.001953125
        %s783 = smul.f32 %s781, %s781
        %s784 = ssub.f32 %s782, %s783
        %s785 = smax.f32 %s784, 0.0
        %s786 = sadd.f32 %s785, 1e-08
        %v787 = vstv %s786
        %v788 = vrsqrt.pop %v787
        %s789 = vtos %v788
        %v790 = vstv %s789
        %v791 = vmul.f32 %v736, %v790
        %v792 = vmul.f32 %v737, %v790
        %v793 = vstv %s781
        %v794 = vmul.f32 %v793, %v791
        %v795 = vmul.f32 %v793, %v792
        %v796 = vsub.f32 %v738, %v794
        %v797 = vsub.f32 %v739, %v795
        %799 = vset.pattern.permute.xlu0 0
        %800 = vperm.xlu0 %799, %v791
        %v801 = vpop.permute.xlu0 %800
        %804 = vset.pattern.permute.xlu0 0
        %805 = vperm.xlu0 %804, %v792
        %v806 = vpop.permute.xlu0 %805
        %v808 = vmul.f32 %v732, %v801
        %v809 = vmul.f32 %v733, %v801
        %v810 = vmul.f32 %v734, %v806
        %v811 = vmul.f32 %v735, %v806
        %813 = vset.pattern.permute.xlu0 0
        %814 = vperm.xlu0 %813, %v796
        %v815 = vpop.permute.xlu0 %814
        %818 = vset.pattern.permute.xlu0 0
        %819 = vperm.xlu0 %818, %v797
        %v820 = vpop.permute.xlu0 %819
        %v822 = vadd.f32 %v808, %v815
        %v823 = vadd.f32 %v809, %v815
        %v824 = vadd.f32 %v810, %v820
        %v825 = vadd.f32 %v811, %v820
        %v826 = vld [vmem:[%s11] sm:$0xff]
        %v827 = vld [vmem:[%s12] sm:$0xff]
        %829 = vset.pattern.permute.xlu0 0
        %830 = vperm.xlu0 %829, %v827
        %v831 = vpop.permute.xlu0 %830
        %837 = vrot.lane.b32.xlu0 %v822, 2
        %v838 = vpop.permute.xlu0 %837
        %839 = vrot.lane.b32.xlu0 %v823, 2
        %v840 = vpop.permute.xlu0 %839
        %841 = vrot.lane.b32.xlu0 %v824, 2
        %v842 = vpop.permute.xlu0 %841
        %843 = vrot.lane.b32.xlu0 %v825, 2
        %v844 = vpop.permute.xlu0 %843
        %v845 = vsel %vm752, %v838, %v840
        %v846 = vsel %vm752, %v842, %v844
        %vm849 = vcmask 130048
        %v851 = vsel %vm849, %v826, 0
        %853 = vmatprep.subr.mxu0 0.0
        %854 = vmatpush1.msra.mxu0 %v845
        %855 = vmatprep.subr.mxu0 0.0
        %856 = vmatpush1.msra.mxu0 %v846
        %857 = vmatprep.subr.mxu0 0.0
        %858 = vmatpush1.msra.mxu0 0.0
        %859 = vmatprep.subr.mxu0 0.0
        %860 = vmatpush1.msra.mxu0 0.0
        %861 = vmatprep.subr.mxu0 0.0
        %862 = vmatpush1.msra.mxu0 0.0
        %863 = vmatprep.subr.mxu0 0.0
        %864 = vmatpush1.msra.mxu0 0.0
        %865 = vmatprep.subr.mxu0 0.0
        %866 = vmatpush1.msra.mxu0 0.0
        %867 = vmatprep.subr.mxu0 0.0
        %868 = vmatpush1.msra.mxu0 0.0
        %869 = vmatprep.subr.mxu0 0.0
        %870 = vmatpush1.msra.mxu0 0.0
        %871 = vmatprep.subr.mxu0 0.0
        %872 = vmatpush1.msra.mxu0 0.0
        %873 = vmatprep.subr.mxu0 0.0
        %874 = vmatpush1.msra.mxu0 0.0
        %875 = vmatprep.subr.mxu0 0.0
        %876 = vmatpush1.msra.mxu0 0.0
        %877 = vmatprep.subr.mxu0 0.0
        %878 = vmatpush1.msra.mxu0 0.0
        %879 = vmatprep.subr.mxu0 0.0
        %880 = vmatpush1.msra.mxu0 0.0
        %881 = vmatprep.subr.mxu0 0.0
        %882 = vmatpush1.msra.mxu0 0.0
        %883 = vmatprep.subr.mxu0 0.0
        %884 = vmatpush1.msra.mxu0 0.0
        %885 = vmatprep.subr.mxu0 0.0
        %886 = vmatpush1.msra.mxu0 0.0
        %887 = vmatprep.subr.mxu0 0.0
        %888 = vmatpush1.msra.mxu0 0.0
        %889 = vmatprep.subr.mxu0 0.0
        %890 = vmatpush1.msra.mxu0 0.0
        %891 = vmatprep.subr.mxu0 0.0
        %892 = vmatpush1.msra.mxu0 0.0
        %893 = vmatprep.subr.mxu0 0.0
        %894 = vmatpush1.msra.mxu0 0.0
        %895 = vmatprep.subr.mxu0 0.0
        %896 = vmatpush1.msra.mxu0 0.0
        %897 = vmatprep.subr.mxu0 0.0
        %898 = vmatpush1.msra.mxu0 0.0
        %899 = vmatprep.subr.mxu0 0.0
        %900 = vmatpush1.msra.mxu0 0.0
        %901 = vmatprep.subr.mxu0 0.0
        %902 = vmatpush1.msra.mxu0 0.0
        %903 = vmatprep.subr.mxu0 0.0
        %904 = vmatpush1.msra.mxu0 0.0
        %905 = vmatprep.subr.mxu0 0.0
        %906 = vmatpush1.msra.mxu0 0.0
        %907 = vmatprep.subr.mxu0 0.0
        %908 = vmatpush1.msra.mxu0 0.0
        %909 = vmatprep.subr.mxu0 0.0
        %910 = vmatpush1.msra.mxu0 0.0
        %911 = vmatprep.subr.mxu0 0.0
        %912 = vmatpush1.msra.mxu0 0.0
        %913 = vmatprep.subr.mxu0 0.0
        %914 = vmatpush1.msra.mxu0 0.0
        %915 = vmatprep.subr.mxu0 0.0
        %916 = vmatpush1.msra.mxu0 0.0
        %917 = vmatprep.mubr.f32.mxu0 0.0
        %918 = vmatmul.mubr.f32.gmra.mrb[0].mxu0 %v851
        %v919 = vpop.f32.mrb[0].mxu0
        %v920 = vadd.f32 %v831, %v919
        %v921 = vpop.f32.mrb[0].mxu0
        %922 = vdwg.mxu0
        %923 = vst [vmem:[%s433] sm:$0xff] %v920
        %s924 = sand.u32 %s315, 1
        %s925 = scalar_lea.sflag [#allocation6], %s924
        %s926 = sand.u32 %s315, 1
        %s927 = smul.addr %s926, 8
        %s928 = scalar_lea.vmem [#allocation5], %s927
        // Predicated region
        $region73: #{tpu_custom_call.1} parent=71 // pred_check
          %p929 = pneg %p325
        $region74: #{tpu_custom_call.1} parent=71 // pred_check_branch
          %931 = sbr.rel (%p929) target = $region76
        $region75: #{tpu_custom_call.1} parent=71 // pred_region
          %s933 = ssub.s32 128, 128
          %934 = vsyncadd %s925, %s933
          %s935 = smul.addr %s29, 128
          %s936 = scalar_lea.hbm %s13, %s935
          %s938 = sshll.u32 %s928, 4
          %s939 = int_to_ptr.vmem [resolvable:$true] %s938
          %941 = dma.vmem_to_hbm [thread:$0]  %s939, 128, %s936, %s925
        $region76: #{tpu_custom_call.1} parent=71 // pred_fallthru
          _
      $region72: #{tpu_custom_call.1} parent=5 // pred_fallthru
        _
      %p942 = scmp.le.s32.totalorder 2, %s24
      // Predicated region
      $region77: #{tpu_custom_call.1} parent=5 // pred_check
        %p943 = pneg %p942
      $region78: #{tpu_custom_call.1} parent=5 // pred_check_branch
        %945 = sbr.rel (%p943) target = $region80
      $region79: #{tpu_custom_call.1} parent=5 // pred_region
        %s946 = ssub.s32 %s24, 2
        // Predicated region
        $region81: #{tpu_custom_call.1} parent=79 // pred_check
          %p947 = pneg %p331
        $region82: #{tpu_custom_call.1} parent=79 // pred_check_branch
          %949 = sbr.rel (%p947) target = $region84
        $region83: #{tpu_custom_call.1} parent=79 // pred_region
          %s950 = sand.u32 %s316, 1
          %s951 = scalar_lea.sflag [#allocation6], %s950
          %s952 = sand.u32 %s316, 1
          %s953 = smul.addr %s952, 8
          %s954 = scalar_lea.vmem [#allocation5], %s953
          %955 = dma.done %s951, 128
        $region84: #{tpu_custom_call.1} parent=79 // pred_fallthru
          _
      $region80: #{tpu_custom_call.1} parent=5 // pred_fallthru
        _
    $region6: #{tpu_custom_call.1} parent=1 // loop_footer
      %s28 = sadd.s32 1, %s24
    $region7: #{tpu_custom_call.1} parent=1 // loop_footer_branch
      %23 = sbr.rel target = $region3
    $region8: #{tpu_custom_call.1} parent=1 // loop_exit
      _
    %956 = vsyncpa [#allocation6], 1
    %s957 = scalar_lea.sflag [#allocation6], 1
    %958 = vsyncpa %s957, 1

</llo_original>
